<compile_context>
chip_gen: v6e
topology: v6e:2x2x1
jax: 0.10.0
libtpu: 0.0.40
codegen_flags: <defaults>
</compile_context>

<pallas_src>
import functools

import jax
import jax.numpy as jnp
import numpy as np
from jax.experimental import pallas as pl
from jax.experimental.pallas import tpu as pltpu


def _stats_kernel(pred_ref, targ_ref, out_ref, acc_ref, *,
                  hw, n_class, tile_s, tiles_per_split, need_mask):
    """Accumulates per-class lane-partial stats into a (4, C, 128) block.

    Stats (per class c, summed over the pixels of this batch/split):
      [0] count            = sum 1[t == c]
      [1] sum p_c * onehot = sum_{t==c} softmax_c
      [2] sum p_c          = softmax mass of class c over all pixels
      [3] sum -log p_t     = sum_{t==c} (lse - x_c)
    """
    j = pl.program_id(2)

    @pl.when(j == 0)
    def _():
        acc_ref[...] = jnp.zeros_like(acc_ref)

    x = pred_ref[...].astype(jnp.float32)      # (C, TS, 128) logits
    t = targ_ref[...].astype(jnp.int32)        # (1, TS, 128) labels

    tile_px = tile_s * 128

    def accumulate(valid):
        # Neutralize out-of-range pixels BEFORE any math so garbage logits
        # (possibly NaN/Inf) cannot propagate through NaN * 0.
        xm = x if valid is None else jnp.where(valid, x, 0.0)

        # Numerically stable softmax over the class axis.  The class axis is
        # the leading (non-vreg) dim, so these reductions are elementwise
        # max/add across C full (TS, 128) slabs — pure VALU, no cross-sublane.
        m = jnp.max(xm, axis=0, keepdims=True)             # (1, TS, 128)
        e = jnp.exp(xm - m)                                # (C, TS, 128)  EUP
        s = jnp.sum(e, axis=0, keepdims=True)              # (1, TS, 128)
        inv_s = pl.reciprocal(s, approx=True)              # EUP
        inv_s = inv_s * (2.0 - s * inv_s)                  # one Newton step
        p = e * inv_s                                      # softmax probs
        lse = m + jnp.log(s)                               # (1, TS, 128)

        cls = jax.lax.broadcasted_iota(jnp.int32, (n_class, tile_s, 128), 0)
        eq = t == cls
        if valid is not None:
            eq = jnp.logical_and(eq, valid)
        onehot = eq.astype(jnp.float32)                    # (C, TS, 128)
        p_valid = p if valid is None else p * valid.astype(jnp.float32)

        # Per-class, lane-partial sums (only the sublane axis is reduced per
        # tile; the 128 lane partials are folded once, in JAX, at the end).
        acc_ref[0, :, :] += jnp.sum(onehot, axis=1)                # count
        acc_ref[1, :, :] += jnp.sum(p * onehot, axis=1)            # sum p*t
        acc_ref[2, :, :] += jnp.sum(p_valid, axis=1)               # sum p
        acc_ref[3, :, :] += jnp.sum(onehot * (lse - xm), axis=1)   # sum nll

    if not need_mask:
        # Exact coverage: the mask code is statically dropped.
        accumulate(None)
    else:
        gblk = pl.program_id(1) * tiles_per_split + j
        tile_start = gblk * tile_px
        is_full = (tile_start + tile_px) <= hw

        @pl.when(is_full)
        def _():
            accumulate(None)

        @pl.when(jnp.logical_not(is_full))
        def _():
            row = jax.lax.broadcasted_iota(jnp.int32, (1, tile_s, 128), 1)
            col = jax.lax.broadcasted_iota(jnp.int32, (1, tile_s, 128), 2)
            accumulate((tile_start + row * 128 + col) < hw)

    @pl.when(j == pl.num_programs(2) - 1)
    def _():
        out_ref[...] = acc_ref[...]


def locally_weighted_tversky_focal_ce_loss(
    predict,
    target,
    *,
    ignore_index=-100,
    tversky_weight=0.5,
    tversky_smooth=1.0,
    tversky_alpha=0.7,
    tversky_gamma=1.33,
    tile_s=None,
    vmem_limit_bytes=None,
):
    n, c, h, w = predict.shape
    assert target.shape == (n, h, w), "target must be [N, H, W] class indices"
    hw = h * w
    n_pixels = n * hw

    if target.dtype != jnp.int32:
        # TODO(synk): cast in-kernel from the native integer dtype to avoid
        # this extra HBM pass (matters on memory-bound v5e).
        target = target.astype(jnp.int32)

    # --- generation-aware VMEM budget -------------------------------------
    if vmem_limit_bytes is None:
        try:
            phys = int(pltpu.get_tpu_info().vmem_capacity_bytes)
        except Exception:  # pragma: no cover - conservative fallback
            phys = 128 * 1024 * 1024
        # ~40 MiB scoped on 64 MiB/TC parts (v7x), ~80 MiB on 128 MiB parts.
        vmem_limit_bytes = min((phys * 5) // 8, 96 * 1024 * 1024)

    # --- pixel-major (N, C, S, 128) view (zero-copy when H*W % 128 == 0) --
    hw_pad = pl.cdiv(hw, 128) * 128
    p3 = predict.reshape(n, c, hw)
    t3 = target.reshape(n, 1, hw)
    if hw_pad != hw:
        # One extra HBM pass; only hit when H*W is not a multiple of 128.
        p3 = jnp.pad(p3, ((0, 0), (0, 0), (0, hw_pad - hw)))
        t3 = jnp.pad(t3, ((0, 0), (0, 0), (0, hw_pad - hw)))
    s_pad = hw_pad // 128
    p4 = p3.reshape(n, c, s_pad, 128)
    t4 = t3.reshape(n, 1, s_pad, 128)

    # --- tile size: biggest block that fits the scoped-VMEM budget ---------
    pred_item = jnp.dtype(predict.dtype).itemsize
    # double-buffered input blocks + ~7 live f32 (C, ·) temporaries per pixel
    per_pixel_bytes = 2 * c * pred_item + 2 * 4 + 7 * c * 4 + 8
    budget = int(vmem_limit_bytes * 0.70)
    auto_s = max(8, min((budget // per_pixel_bytes) // 128, 8192))
    if tile_s is None:
        tile_s = auto_s
    if tile_s >= s_pad or s_pad <= 8:
        tile_s = s_pad                        # block == full dim: always legal
    else:
        tile_s = max(8, (tile_s // 8) * 8)    # (8, 128) block-shape rule

    num_tiles = pl.cdiv(s_pad, tile_s)
    # Second "parallel" axis: split the pixel range in two so both TensorCores
    # on v7x stay busy when the batch axis alone cannot feed them.
    splits = 2 if (n % 2 == 1 and num_tiles >= 2) else 1
    tiles_per_split = pl.cdiv(num_tiles, splits)
    need_mask = (splits * tiles_per_split * tile_s * 128) != hw
    last_blk = num_tiles - 1

    def chunk_idx(s_idx, j_idx):
        blk = s_idx * tiles_per_split + j_idx
        if need_mask:
            # Clamp fully-out-of-range blocks back in bounds; their
            # contribution is masked to zero inside the kernel.
            blk = jnp.minimum(blk, last_blk)
        return blk

    kernel = functools.partial(
        _stats_kernel, hw=hw, n_class=c, tile_s=tile_s,
        tiles_per_split=tiles_per_split, need_mask=need_mask)

    stats = pl.pallas_call(
        kernel,
        out_shape=jax.ShapeDtypeStruct((n, splits, 4, c, 128), jnp.float32),
        grid_spec=pltpu.PrefetchScalarGridSpec(
            num_scalar_prefetch=0,
            grid=(n, splits, tiles_per_split),
            in_specs=[
                # leading batch dim squeezed; kernel sees (C, tile_s, 128)
                pl.BlockSpec((None, c, tile_s, 128),
                             lambda b, s, j: (b, 0, chunk_idx(s, j), 0)),
                # kernel sees (1, tile_s, 128)
                pl.BlockSpec((None, 1, tile_s, 128),
                             lambda b, s, j: (b, 0, chunk_idx(s, j), 0)),
            ],
            out_specs=pl.BlockSpec((None, None, 4, c, 128),
                                   lambda b, s, j: (b, s, 0, 0, 0)),
            scratch_shapes=[pltpu.VMEM((4, c, 128), jnp.float32)],
        ),
        compiler_params=pltpu.CompilerParams(
            # batch & pixel-split axes parallel; pixel tiles are the reduction
            dimension_semantics=("parallel", "parallel", "arbitrary"),
            vmem_limit_bytes=vmem_limit_bytes,
        ),
    )(p4, t4)

    # (N, SPLITS, 4, C, 128) -> (4, C): fold batch, split and lane partials.
    stats = jnp.sum(stats, axis=(0, 1, 4))
    cnt = stats[0]     # pixels per class
    pt = stats[1]      # sum_pixels p_c * 1[t==c]
    psum = stats[2]    # sum_pixels p_c
    nll = stats[3]     # sum_{pixels with t==c} -log p_c

    # --- lossWeight: inverse label frequency (torch.unique + scatter logic) --
    classes = jnp.arange(c)
    present = (cnt > 0) & (classes != ignore_index)
    inv = jnp.where(present, n_pixels / jnp.maximum(cnt, 1.0), 0.0)
    w_present = inv / jnp.sum(inv)
    loss_weight = jnp.where(present, w_present, 1e-5)

    # --- Tversky focal loss (per class, weighted sum) -------------------------
    alpha = tversky_alpha
    beta = 1.0 - tversky_alpha
    num = pt + tversky_smooth
    den = pt + alpha * (cnt - pt) + beta * (psum - pt) + tversky_smooth
    tv = jnp.power(1.0 - num / den, 1.0 / tversky_gamma)
    class_mask = (classes != ignore_index).astype(jnp.float32)
    tversky_loss = jnp.sum(loss_weight * tv * class_mask)

    # --- weighted cross entropy (reduction='mean', weight-normalized) --------
    # TODO(synk): per-pixel ignore_index exclusion (CE denominator / Tversky FP
    # term) only matters when ignore_index is a valid class in [0, C); for the
    # default ignore_index=-100 labels never match it, so semantics are exact.
    ce_loss = jnp.sum(loss_weight * nll) / jnp.sum(loss_weight * cnt)

    return tversky_weight * tversky_loss + (1.0 - tversky_weight) * ce_loss


def _reference_loss(predict, target, **kw):
    """Pure-JAX reference of the same math (sanity check of kernel plumbing)."""
    n, c, h, w = predict.shape
    n_pixels = n * h * w
    logits = jnp.transpose(predict, (1, 0, 2, 3)).reshape(c, n_pixels)
    labels = target.reshape(n_pixels)
    p = jax.nn.softmax(logits, axis=0)
    logp = jax.nn.log_softmax(logits, axis=0)
    onehot = jax.nn.one_hot(labels, c, dtype=jnp.float32).T        # (C, P)
    cnt = jnp.sum(onehot, axis=1)
    pt = jnp.sum(p * onehot, axis=1)
    psum = jnp.sum(p, axis=1)
    nll = jnp.sum(-logp * onehot, axis=1)
    present = cnt > 0
    inv = jnp.where(present, n_pixels / jnp.maximum(cnt, 1.0), 0.0)
    lw = jnp.where(present, inv / jnp.sum(inv), 1e-5)
    alpha, beta, smooth, gamma = 0.7, 0.3, 1.0, 1.33
    num = pt + smooth
    den = pt + alpha * (cnt - pt) + beta * (psum - pt) + smooth
    tv = jnp.sum(lw * jnp.power(1.0 - num / den, 1.0 / gamma))
    ce = jnp.sum(lw * nll) / jnp.sum(lw * cnt)
    return 0.5 * tv + 0.5 * ce


if __name__ == "__main__":
    key = jax.random.PRNGKey(0)

    # Test 1: canonical small shapes (even batch -> single split, maskless path).
    k1, k2 = jax.random.split(key)
    N, C, H, W = 2, 4, 16, 16
    predict = jax.random.normal(k1, (N, C, H, W), dtype=jnp.float32)
    target = jax.random.randint(k2, (N, H, W), 0, C, dtype=jnp.int32)
    loss = locally_weighted_tversky_focal_ce_loss(predict, target)
    jax.block_until_ready(loss)
    ref = _reference_loss(predict, target)
    np.testing.assert_allclose(np.asarray(loss), np.asarray(ref),
                               rtol=5e-4, atol=1e-5)

    # Test 2: odd batch -> 2-way pixel split (second parallel axis), odd tile
    # count -> clamped index_map + in-kernel tail masking (small tile forced).
    k3, k4 = jax.random.split(k2)
    N2, C2, H2, W2 = 1, 5, 64, 48
    predict2 = jax.random.normal(k3, (N2, C2, H2, W2), dtype=jnp.float32)
    target2 = jax.random.randint(k4, (N2, H2, W2), 0, C2, dtype=jnp.int32)
    loss2 = locally_weighted_tversky_focal_ce_loss(predict2, target2, tile_s=8)
    jax.block_until_ready(loss2)
    ref2 = _reference_loss(predict2, target2)
    np.testing.assert_allclose(np.asarray(loss2), np.asarray(ref2),
                               rtol=5e-4, atol=1e-5)

    print("KERNEL_OK")
</pallas_src>

<mosaic_0001>
module attributes {stable_mosaic.version = 11 : i64} {
  func.func @_stats_kernel(%arg0: i32, %arg1: i32, %arg2: i32, %arg3: memref<1x4x2x128xf32, #tpu.memory_space<vmem>>, %arg4: memref<1x1x2x128xi32, #tpu.memory_space<vmem>>, %arg5: memref<1x1x4x4x128xf32, #tpu.memory_space<vmem>>, %arg6: memref<4x4x128xf32, #tpu.memory_space<vmem>>) attributes {dimension_semantics = [#tpu.dimension_semantics<parallel>, #tpu.dimension_semantics<parallel>, #tpu.dimension_semantics<arbitrary>], iteration_bounds = array<i64: 2, 1, 1>, scalar_prefetch = 0 : i64, scratch_operands = 1 : i64, tpu.core_type = #tpu.core_type<tc>, window_params = [{transform_indices = @transform_0, window_bounds = array<i64: 1, 4, 2, 128>}, {transform_indices = @transform_1, window_bounds = array<i64: 1, 1, 2, 128>}, {transform_indices = @transform_2, window_bounds = array<i64: 1, 1, 4, 4, 128>}]} {
    %c0_i32 = arith.constant 0 : i32
    %0 = arith.cmpi eq, %arg2, %c0_i32 : i32
    %1 = arith.extui %0 : i1 to i32
    %c0_i32_0 = arith.constant 0 : i32
    %2 = arith.cmpi ne, %1, %c0_i32_0 : i32
    scf.if %2 {
      %cst_37 = arith.constant 0.000000e+00 : f32
      %63 = vector.broadcast %cst_37 : f32 to vector<4x4x128xf32>
      %c0_38 = arith.constant 0 : index
      %c0_39 = arith.constant 0 : index
      %c0_40 = arith.constant 0 : index
      %64 = vector.load %arg6[%c0_38, %c0_39, %c0_40] : memref<4x4x128xf32, #tpu.memory_space<vmem>>, vector<4x4x128xf32>
      tpu.vector_store %arg6[%c0_38, %c0_39, %c0_40], %63 {strides = array<i32>} : memref<4x4x128xf32, #tpu.memory_space<vmem>>, vector<4x4x128xf32>,
    } else {
    }
    %c0 = arith.constant 0 : index
    %c0_1 = arith.constant 0 : index
    %c0_2 = arith.constant 0 : index
    %c0_3 = arith.constant 0 : index
    %3 = vector.load %arg3[%c0, %c0_1, %c0_2, %c0_3] : memref<1x4x2x128xf32, #tpu.memory_space<vmem>>, vector<1x4x2x128xf32>
    %4 = vector.shape_cast %3 : vector<1x4x2x128xf32> to vector<4x2x128xf32>
    %c0_4 = arith.constant 0 : index
    %c0_5 = arith.constant 0 : index
    %c0_6 = arith.constant 0 : index
    %c0_7 = arith.constant 0 : index
    %5 = vector.load %arg4[%c0_4, %c0_5, %c0_6, %c0_7] : memref<1x1x2x128xi32, #tpu.memory_space<vmem>>, vector<1x1x2x128xi32>
    %6 = vector.shape_cast %5 : vector<1x1x2x128xi32> to vector<1x2x128xi32>
    %cst = arith.constant dense<0xFF800000> : vector<2x128xf32>
    %7 = vector.multi_reduction <maximumf>, %4, %cst [0] : vector<4x2x128xf32> to vector<2x128xf32>
    %8 = vector.shape_cast %7 : vector<2x128xf32> to vector<1x2x128xf32>
    %9 = vector.broadcast %8 : vector<1x2x128xf32> to vector<4x2x128xf32>
    %10 = arith.subf %4, %9 : vector<4x2x128xf32>
    %11 = math.exp %10 : vector<4x2x128xf32>
    %cst_8 = arith.constant dense<0.000000e+00> : vector<2x128xf32>
    %12 = vector.multi_reduction <add>, %11, %cst_8 [0] : vector<4x2x128xf32> to vector<2x128xf32>
    %13 = vector.shape_cast %12 : vector<2x128xf32> to vector<1x2x128xf32>
    %14 = tpu.reciprocal %13 {approx = true} : vector<1x2x128xf32> -> vector<1x2x128xf32>
    %15 = arith.mulf %13, %14 : vector<1x2x128xf32>
    %cst_9 = arith.constant 2.000000e+00 : f32
    %16 = vector.broadcast %cst_9 : f32 to vector<1x2x128xf32>
    %17 = arith.subf %16, %15 : vector<1x2x128xf32>
    %18 = arith.mulf %14, %17 : vector<1x2x128xf32>
    %19 = vector.broadcast %18 : vector<1x2x128xf32> to vector<4x2x128xf32>
    %20 = arith.mulf %11, %19 : vector<4x2x128xf32>
    %21 = math.log %13 : vector<1x2x128xf32>
    %22 = arith.addf %8, %21 : vector<1x2x128xf32>
    %23 = tpu.iota {dimensions = array<i32: 0>} : vector<4x2x128xi32>
    %24 = vector.broadcast %6 : vector<1x2x128xi32> to vector<4x2x128xi32>
    %25 = arith.cmpi eq, %24, %23 : vector<4x2x128xi32>
    %26 = arith.extui %25 : vector<4x2x128xi1> to vector<4x2x128xi32>
    %27 = arith.sitofp %26 : vector<4x2x128xi32> to vector<4x2x128xf32>
    %c0_10 = arith.constant 0 : index
    %c0_11 = arith.constant 0 : index
    %c0_12 = arith.constant 0 : index
    %28 = vector.load %arg6[%c0_10, %c0_11, %c0_12] : memref<4x4x128xf32, #tpu.memory_space<vmem>>, vector<1x4x128xf32>
    %29 = vector.shape_cast %28 : vector<1x4x128xf32> to vector<4x128xf32>
    %cst_13 = arith.constant dense<0.000000e+00> : vector<4x128xf32>
    %30 = vector.multi_reduction <add>, %27, %cst_13 [1] : vector<4x2x128xf32> to vector<4x128xf32>
    %31 = arith.addf %29, %30 : vector<4x128xf32>
    %c0_14 = arith.constant 0 : index
    %c0_15 = arith.constant 0 : index
    %c0_16 = arith.constant 0 : index
    %32 = vector.load %arg6[%c0_14, %c0_15, %c0_16] : memref<4x4x128xf32, #tpu.memory_space<vmem>>, vector<1x4x128xf32>
    %33 = vector.shape_cast %32 : vector<1x4x128xf32> to vector<4x128xf32>
    %34 = vector.shape_cast %31 : vector<4x128xf32> to vector<1x4x128xf32>
    tpu.vector_store %arg6[%c0_14, %c0_15, %c0_16], %34 {strides = array<i32>} : memref<4x4x128xf32, #tpu.memory_space<vmem>>, vector<1x4x128xf32>,
    %c1 = arith.constant 1 : index
    %c0_17 = arith.constant 0 : index
    %c0_18 = arith.constant 0 : index
    %35 = vector.load %arg6[%c1, %c0_17, %c0_18] : memref<4x4x128xf32, #tpu.memory_space<vmem>>, vector<1x4x128xf32>
    %36 = vector.shape_cast %35 : vector<1x4x128xf32> to vector<4x128xf32>
    %37 = arith.mulf %20, %27 : vector<4x2x128xf32>
    %cst_19 = arith.constant dense<0.000000e+00> : vector<4x128xf32>
    %38 = vector.multi_reduction <add>, %37, %cst_19 [1] : vector<4x2x128xf32> to vector<4x128xf32>
    %39 = arith.addf %36, %38 : vector<4x128xf32>
    %c1_20 = arith.constant 1 : index
    %c0_21 = arith.constant 0 : index
    %c0_22 = arith.constant 0 : index
    %40 = vector.load %arg6[%c1_20, %c0_21, %c0_22] : memref<4x4x128xf32, #tpu.memory_space<vmem>>, vector<1x4x128xf32>
    %41 = vector.shape_cast %40 : vector<1x4x128xf32> to vector<4x128xf32>
    %42 = vector.shape_cast %39 : vector<4x128xf32> to vector<1x4x128xf32>
    tpu.vector_store %arg6[%c1_20, %c0_21, %c0_22], %42 {strides = array<i32>} : memref<4x4x128xf32, #tpu.memory_space<vmem>>, vector<1x4x128xf32>,
    %c2 = arith.constant 2 : index
    %c0_23 = arith.constant 0 : index
    %c0_24 = arith.constant 0 : index
    %43 = vector.load %arg6[%c2, %c0_23, %c0_24] : memref<4x4x128xf32, #tpu.memory_space<vmem>>, vector<1x4x128xf32>
    %44 = vector.shape_cast %43 : vector<1x4x128xf32> to vector<4x128xf32>
    %cst_25 = arith.constant dense<0.000000e+00> : vector<4x128xf32>
    %45 = vector.multi_reduction <add>, %20, %cst_25 [1] : vector<4x2x128xf32> to vector<4x128xf32>
    %46 = arith.addf %44, %45 : vector<4x128xf32>
    %c2_26 = arith.constant 2 : index
    %c0_27 = arith.constant 0 : index
    %c0_28 = arith.constant 0 : index
    %47 = vector.load %arg6[%c2_26, %c0_27, %c0_28] : memref<4x4x128xf32, #tpu.memory_space<vmem>>, vector<1x4x128xf32>
    %48 = vector.shape_cast %47 : vector<1x4x128xf32> to vector<4x128xf32>
    %49 = vector.shape_cast %46 : vector<4x128xf32> to vector<1x4x128xf32>
    tpu.vector_store %arg6[%c2_26, %c0_27, %c0_28], %49 {strides = array<i32>} : memref<4x4x128xf32, #tpu.memory_space<vmem>>, vector<1x4x128xf32>,
    %c3 = arith.constant 3 : index
    %c0_29 = arith.constant 0 : index
    %c0_30 = arith.constant 0 : index
    %50 = vector.load %arg6[%c3, %c0_29, %c0_30] : memref<4x4x128xf32, #tpu.memory_space<vmem>>, vector<1x4x128xf32>
    %51 = vector.shape_cast %50 : vector<1x4x128xf32> to vector<4x128xf32>
    %52 = vector.broadcast %22 : vector<1x2x128xf32> to vector<4x2x128xf32>
    %53 = arith.subf %52, %4 : vector<4x2x128xf32>
    %54 = arith.mulf %27, %53 : vector<4x2x128xf32>
    %cst_31 = arith.constant dense<0.000000e+00> : vector<4x128xf32>
    %55 = vector.multi_reduction <add>, %54, %cst_31 [1] : vector<4x2x128xf32> to vector<4x128xf32>
    %56 = arith.addf %51, %55 : vector<4x128xf32>
    %c3_32 = arith.constant 3 : index
    %c0_33 = arith.constant 0 : index
    %c0_34 = arith.constant 0 : index
    %57 = vector.load %arg6[%c3_32, %c0_33, %c0_34] : memref<4x4x128xf32, #tpu.memory_space<vmem>>, vector<1x4x128xf32>
    %58 = vector.shape_cast %57 : vector<1x4x128xf32> to vector<4x128xf32>
    %59 = vector.shape_cast %56 : vector<4x128xf32> to vector<1x4x128xf32>
    tpu.vector_store %arg6[%c3_32, %c0_33, %c0_34], %59 {strides = array<i32>} : memref<4x4x128xf32, #tpu.memory_space<vmem>>, vector<1x4x128xf32>,
    %c0_i32_35 = arith.constant 0 : i32
    %60 = arith.cmpi eq, %arg2, %c0_i32_35 : i32
    %61 = arith.extui %60 : i1 to i32
    %c0_i32_36 = arith.constant 0 : i32
    %62 = arith.cmpi ne, %61, %c0_i32_36 : i32
    scf.if %62 {
      %c0_37 = arith.constant 0 : index
      %c0_38 = arith.constant 0 : index
      %c0_39 = arith.constant 0 : index
      %63 = vector.load %arg6[%c0_37, %c0_38, %c0_39] : memref<4x4x128xf32, #tpu.memory_space<vmem>>, vector<4x4x128xf32>
      %c0_40 = arith.constant 0 : index
      %c0_41 = arith.constant 0 : index
      %c0_42 = arith.constant 0 : index
      %c0_43 = arith.constant 0 : index
      %c0_44 = arith.constant 0 : index
      %64 = vector.load %arg5[%c0_40, %c0_41, %c0_42, %c0_43, %c0_44] : memref<1x1x4x4x128xf32, #tpu.memory_space<vmem>>, vector<1x1x4x4x128xf32>
      %65 = vector.shape_cast %64 : vector<1x1x4x4x128xf32> to vector<4x4x128xf32>
      %66 = vector.shape_cast %63 : vector<4x4x128xf32> to vector<1x1x4x4x128xf32>
      tpu.vector_store %arg5[%c0_40, %c0_41, %c0_42, %c0_43, %c0_44], %66 {strides = array<i32>} : memref<1x1x4x4x128xf32, #tpu.memory_space<vmem>>, vector<1x1x4x4x128xf32>,
    } else {
    }
    return
  }
  func.func @transform_0(%arg0: i32, %arg1: i32, %arg2: i32) -> (i32, i32, i32, i32) {
    %c1_i32 = arith.constant 1 : i32
    %0 = arith.muli %arg1, %c1_i32 : i32
    %1 = arith.addi %0, %arg2 : i32
    %c0_i32 = arith.constant 0 : i32
    %c0_i32_0 = arith.constant 0 : i32
    %c0_i32_1 = arith.constant 0 : i32
    return %arg0, %c0_i32, %1, %c0_i32_0 : i32, i32, i32, i32
  }
  func.func @transform_1(%arg0: i32, %arg1: i32, %arg2: i32) -> (i32, i32, i32, i32) {
    %c1_i32 = arith.constant 1 : i32
    %0 = arith.muli %arg1, %c1_i32 : i32
    %1 = arith.addi %0, %arg2 : i32
    %c0_i32 = arith.constant 0 : i32
    %c0_i32_0 = arith.constant 0 : i32
    %c0_i32_1 = arith.constant 0 : i32
    return %arg0, %c0_i32, %1, %c0_i32_0 : i32, i32, i32, i32
  }
  func.func @transform_2(%arg0: i32, %arg1: i32, %arg2: i32) -> (i32, i32, i32, i32, i32) {
    %c0_i32 = arith.constant 0 : i32
    %c0_i32_0 = arith.constant 0 : i32
    %c0_i32_1 = arith.constant 0 : i32
    %c0_i32_2 = arith.constant 0 : i32
    return %arg0, %arg1, %c0_i32, %c0_i32_0, %c0_i32_1 : i32, i32, i32, i32, i32
  }
}

</mosaic_0001>

<llo_original>
// kernel: tpu_custom_call.1
$region0: #{tpu_custom_call.1}
  #allocation0 [shape = 'u32[]', space=smem, size = 0x4, offset = 0x4, fixed_abs, tag = 'smem constant byte address 0x4 - core index']
  #allocation1 [shape = 'u32[144,128]{1,0:T(1,128)}', space=vmem, size = 0x12000, scoped, tag = 'internal scratch']
  #allocation2 [shape = 'f32[4,4,128]{2,1,0:T(4,128)}', space=vmem, size = 0x2000, scoped, tag = 'scratch operand']
  %s0 = inlined_call_operand.hbm [shape: f32[2,4,2,128], index: 0, kind: input, shape index: {}]
  %s1 = inlined_call_operand.hbm [shape: s32[2,1,2,128], index: 1, kind: input, shape index: {}]
  %s2 = inlined_call_operand.hbm [shape: f32[2,1,4,4,128], index: 2, kind: output, shape index: {}]
  %s3 = sld [smem:[#allocation0]]
  $region57: #{tpu_custom_call.1} parent=0
    _
  %s5 = ssub.s32 1, %s3
  %s6 = scalar_select 0, %s5, %s3
  $region1: #{tpu_custom_call.1} parent=0
    #allocation3 [shape = 'u8[8192]{0}', space=vmem, size = 0x2000, scoped, tag = 'input window, operand 0']
    #allocation4 [shape = 's32[2]{0}', space=sflag, size = 0x8, scoped, tag = 'scoped memory for tpu_custom_call.1']
    #allocation5 [shape = 's32[2]{0}', space=sflag, size = 0x8, scoped, tag = 'scoped memory for tpu_custom_call.1']
    #allocation6 [shape = 'u8[2048]{0}', space=vmem, size = 0x800, scoped, tag = 'input window, operand 1']
    #allocation7 [shape = 's32[2]{0}', space=sflag, size = 0x8, scoped, tag = 'scoped memory for tpu_custom_call.1']
    #allocation8 [shape = 'u8[16384]{0}', space=vmem, size = 0x4000, scoped, tag = 'output window, operand 0']
    %7 = vsyncpa [#allocation4], 0
    %s8 = scalar_lea.sflag [#allocation4], 1
    %9 = vsyncpa %s8, 0
    %10 = vsyncpa [#allocation7], 0
    %s11 = scalar_lea.sflag [#allocation7], 1
    %12 = vsyncpa %s11, 0
    %13 = vsyncpa [#allocation5], 0
    %s14 = scalar_lea.sflag [#allocation5], 1
    %15 = vsyncpa %s14, 0
    loop: start=0, step=1, limit=4
    $region2: #{tpu_custom_call.1} parent=1 // loop_pre_header
      _
    $region3: #{tpu_custom_call.1} parent=1 // loop_header
      %s17 = sphi 0, %s21
      %p18 = scmp.ge.s32.totalorder %s17, 4
      %s24 = sphi 0, %s43
      %s25 = sphi 0, %s39
      %s26 = sphi 0, %s35
      %s27 = sphi 0, %s24
      %s28 = sphi 0, %s25
      %s29 = sphi 0, %s26
      %s30 = sphi 0, %s27
      %s31 = sphi 0, %s28
      %s32 = sphi 0, %s29
      %s50 = sphi 0, %s52
      %s53 = sphi 0, %s50
      %s54 = sphi 0, %s53
      %s70 = sphi 0, %s54
      %s80 = sphi 0, %s82
      %s83 = sphi 0, %s80
      %s84 = sphi 0, %s83
      %s100 = sphi 0, %s84
      %s108 = sphi 0, %s110
      %s111 = sphi 0, %s108
      %s112 = sphi 0, %s111
      %s128 = sphi 0, %s112
    $region4: #{tpu_custom_call.1} parent=1 // loop_header_branch
      %20 = sbr.rel (%p18) target = $region8
    $region5: #{tpu_custom_call.1} parent=1 // loop_body
      %s22 = ssub.s32 %s17, 1
      %s23 = ssub.s32 %s17, 2
      %s33 = sadd.s32 1, %s26
      %p34 = scmp.ge.s32.totalorder %s33, 1
      %s35 = scalar_select %p34, 0, %s33
      %s36 = sadd.s32 1, %s25
      %s37 = scalar_select %p34, %s36, %s25
      %p38 = scmp.ge.s32.totalorder %s37, 1
      %s39 = scalar_select %p38, 0, %s37
      %s40 = sadd.s32 1, %s24
      %s41 = scalar_select %p38, %s40, %s24
      %p42 = scmp.ge.s32.totalorder %s41, 2
      %s43 = scalar_select %p42, 0, %s41
      %s44 = sadd.s32 %s25, %s26
      %s45 = sadd.s32 %s39, %s35
      %s46 = ssub.s32 %s24, %s43
      %s47 = ssub.s32 %s44, %s45
      %s48 = sor.u32 %s46, %s47
      %p49 = scmp.eq.s32.totalorder %s48, 0
      %s51 = sadd.s32 %s50, 1
      %s52 = scalar_select %p49, %s50, %s51
      %p55 = pneg %p49
      %p56 = scmp.eq.s32.totalorder %s17, 1
      %p57 = por %p55, %p56
      %p58 = scmp.ne.s32.totalorder %s50, %s53
      %p59 = scmp.eq.s32.totalorder %s17, 0
      %p60 = por %p58, %p59
      %p61 = scmp.ne.s32.totalorder %s50, %s53
      %p62 = scmp.eq.s32.totalorder %s22, 1
      %p63 = por %p61, %p62
      %p64 = scmp.ne.s32.totalorder %s53, %s54
      %p65 = scmp.eq.s32.totalorder %s22, 0
      %p66 = por %p64, %p65
      %p67 = scmp.ne.s32.totalorder %s53, %s54
      %p68 = scmp.eq.s32.totalorder %s23, 1
      %p69 = por %p67, %p68
      %p71 = scmp.ne.s32.totalorder %s54, %s70
      %p72 = scmp.eq.s32.totalorder %s23, 0
      %p73 = por %p71, %p72
      %s74 = sadd.s32 %s25, %s26
      %s75 = sadd.s32 %s39, %s35
      %s76 = ssub.s32 %s24, %s43
      %s77 = ssub.s32 %s74, %s75
      %s78 = sor.u32 %s76, %s77
      %p79 = scmp.eq.s32.totalorder %s78, 0
      %s81 = sadd.s32 %s80, 1
      %s82 = scalar_select %p79, %s80, %s81
      %p85 = pneg %p79
      %p86 = scmp.eq.s32.totalorder %s17, 1
      %p87 = por %p85, %p86
      %p88 = scmp.ne.s32.totalorder %s80, %s83
      %p89 = scmp.eq.s32.totalorder %s17, 0
      %p90 = por %p88, %p89
      %p91 = scmp.ne.s32.totalorder %s80, %s83
      %p92 = scmp.eq.s32.totalorder %s22, 1
      %p93 = por %p91, %p92
      %p94 = scmp.ne.s32.totalorder %s83, %s84
      %p95 = scmp.eq.s32.totalorder %s22, 0
      %p96 = por %p94, %p95
      %p97 = scmp.ne.s32.totalorder %s83, %s84
      %p98 = scmp.eq.s32.totalorder %s23, 1
      %p99 = por %p97, %p98
      %p101 = scmp.ne.s32.totalorder %s84, %s100
      %p102 = scmp.eq.s32.totalorder %s23, 0
      %p103 = por %p101, %p102
      %s104 = ssub.s32 %s24, %s43
      %s105 = ssub.s32 %s25, %s39
      %s106 = sor.u32 %s104, %s105
      %p107 = scmp.eq.s32.totalorder %s106, 0
      %s109 = sadd.s32 %s108, 1
      %s110 = scalar_select %p107, %s108, %s109
      %p113 = pneg %p107
      %p114 = scmp.eq.s32.totalorder %s17, 1
      %p115 = por %p113, %p114
      %p116 = scmp.ne.s32.totalorder %s108, %s111
      %p117 = scmp.eq.s32.totalorder %s17, 0
      %p118 = por %p116, %p117
      %p119 = scmp.ne.s32.totalorder %s108, %s111
      %p120 = scmp.eq.s32.totalorder %s22, 1
      %p121 = por %p119, %p120
      %p122 = scmp.ne.s32.totalorder %s111, %s112
      %p123 = scmp.eq.s32.totalorder %s22, 0
      %p124 = por %p122, %p123
      %p125 = scmp.ne.s32.totalorder %s111, %s112
      %p126 = scmp.eq.s32.totalorder %s23, 1
      %p127 = por %p125, %p126
      %p129 = scmp.ne.s32.totalorder %s112, %s128
      %p130 = scmp.eq.s32.totalorder %s23, 0
      %p131 = por %p129, %p130
      %p132 = scmp.le.s32.totalorder 1, %s17
      %p133 = scmp.lt.s32.totalorder %s17, 3
      %p134 = pnand %p132, %p133
      %p135 = pneg %p134
      // Predicated region
      $region9: #{tpu_custom_call.1} parent=5 // pred_check
        _
      $region10: #{tpu_custom_call.1} parent=5 // pred_check_branch
        %137 = sbr.rel (%p134) target = $region12
      $region11: #{tpu_custom_call.1} parent=5 // pred_region
        %s138 = ssub.s32 %s17, 1
      $region12: #{tpu_custom_call.1} parent=5 // pred_fallthru
        _
      %p139 = scmp.lt.s32.totalorder %s17, 2
      // Predicated region
      $region13: #{tpu_custom_call.1} parent=5 // pred_check
        %p140 = pneg %p139
      $region14: #{tpu_custom_call.1} parent=5 // pred_check_branch
        %142 = sbr.rel (%p140) target = $region16
      $region15: #{tpu_custom_call.1} parent=5 // pred_region
        // Predicated region
        $region17: #{tpu_custom_call.1} parent=15 // pred_check
          %p143 = pneg %p60
        $region18: #{tpu_custom_call.1} parent=15 // pred_check_branch
          %145 = sbr.rel (%p143) target = $region20
        $region19: #{tpu_custom_call.1} parent=15 // pred_region
          %s146 = sand.u32 %s50, 1
          %s147 = scalar_lea.sflag [#allocation4], %s146
          %s148 = sand.u32 %s50, 1
          %s149 = smul.addr %s148, 8
          %s150 = scalar_lea.vmem [#allocation3], %s149
          %s151 = sadd.s32 %s25, %s26
          %s153 = ssub.s32 128, 128
          %154 = vsyncadd %s147, %s153
          %s155 = smul.addr %s24, 4
          %s156 = sadd.s32 %s151, %s155
          %s157 = smul.addr %s156, 32
          %s158 = scalar_lea.hbm %s0, %s157
          %s159 = sshll.u32 %s150, 4
          %s160 = int_to_ptr.vmem [resolvable:$true] %s159
          %165 = dma.hbm_to_vmem [thread:$0]  %s158, 128, %s160, %s147, 32, 32, 2
        $region20: #{tpu_custom_call.1} parent=15 // pred_fallthru
          _
        // Predicated region
        $region21: #{tpu_custom_call.1} parent=15 // pred_check
          %p166 = pneg %p90
        $region22: #{tpu_custom_call.1} parent=15 // pred_check_branch
          %168 = sbr.rel (%p166) target = $region24
        $region23: #{tpu_custom_call.1} parent=15 // pred_region
          %s169 = sand.u32 %s80, 1
          %s170 = scalar_lea.sflag [#allocation7], %s169
          %s171 = sand.u32 %s80, 1
          %s172 = smul.addr %s171, 2
          %s173 = scalar_lea.vmem [#allocation6], %s172
          %s174 = sadd.s32 %s25, %s26
          %s176 = ssub.s32 32, 32
          %177 = vsyncadd %s170, %s176
          %s178 = sadd.s32 %s174, %s24
          %s179 = smul.addr %s178, 32
          %s180 = scalar_lea.hbm %s1, %s179
          %s182 = sshll.u32 %s173, 4
          %s183 = int_to_ptr.vmem [resolvable:$true] %s182
          %185 = dma.hbm_to_vmem [thread:$0]  %s180, 32, %s183, %s170
        $region24: #{tpu_custom_call.1} parent=15 // pred_fallthru
          _
      $region16: #{tpu_custom_call.1} parent=5 // pred_fallthru
        _
      %p186 = scmp.le.s32.totalorder 1, %s17
      %p187 = scmp.lt.s32.totalorder %s17, 3
      %p188 = pnand %p186, %p187
      %p189 = pneg %p188
      // Predicated region
      $region25: #{tpu_custom_call.1} parent=5 // pred_check
        _
      $region26: #{tpu_custom_call.1} parent=5 // pred_check_branch
        %191 = sbr.rel (%p188) target = $region28
      $region27: #{tpu_custom_call.1} parent=5 // pred_region
        %s192 = ssub.s32 %s17, 1
        %s193 = sand.u32 %s53, 1
        %s194 = scalar_lea.sflag [#allocation4], %s193
        %s195 = sand.u32 %s53, 1
        %s196 = smul.addr %s195, 8
        %s197 = scalar_lea.vmem [#allocation3], %s196
        // Predicated region
        $region29: #{tpu_custom_call.1} parent=27 // pred_check
          %p198 = pneg %p66
        $region30: #{tpu_custom_call.1} parent=27 // pred_check_branch
          %200 = sbr.rel (%p198) target = $region32
        $region31: #{tpu_custom_call.1} parent=27 // pred_region
          %201 = dma.done %s194, 128
        $region32: #{tpu_custom_call.1} parent=27 // pred_fallthru
          _
        %s202 = sand.u32 %s83, 1
        %s203 = scalar_lea.sflag [#allocation7], %s202
        %s204 = sand.u32 %s83, 1
        %s205 = smul.addr %s204, 2
        %s206 = scalar_lea.vmem [#allocation6], %s205
        // Predicated region
        $region33: #{tpu_custom_call.1} parent=27 // pred_check
          %p207 = pneg %p96
        $region34: #{tpu_custom_call.1} parent=27 // pred_check_branch
          %209 = sbr.rel (%p207) target = $region36
        $region35: #{tpu_custom_call.1} parent=27 // pred_region
          %210 = dma.done %s203, 32
        $region36: #{tpu_custom_call.1} parent=27 // pred_fallthru
          _
        %s211 = sand.u32 %s53, 1
        %s212 = scalar_lea.sflag [#allocation4], %s211
        %s213 = sand.u32 %s53, 1
        %s214 = smul.addr %s213, 8
        %s215 = scalar_lea.vmem [#allocation3], %s214
        %p216 = pneg %p66
        %p217 = pneg %p63
        %s218 = sand.u32 %s83, 1
        %s219 = scalar_lea.sflag [#allocation7], %s218
        %s220 = sand.u32 %s83, 1
        %s221 = smul.addr %s220, 2
        %s222 = scalar_lea.vmem [#allocation6], %s221
        %p223 = pneg %p96
        %p224 = pneg %p93
        %p225 = pneg %p124
        %p226 = pneg %p121
        %s227 = sand.u32 %s111, 1
        %s228 = scalar_lea.sflag [#allocation5], %s227
        %s229 = sand.u32 %s111, 1
        %s230 = smul.addr %s229, 16
        %s231 = scalar_lea.vmem [#allocation8], %s230
        %s232 = sadd.s32 %s28, %s29
        %s233 = sadd.s32 %s28, %s29
        %p234 = scmp.eq.s32.totalorder %s29, 0
        // Predicated region
        $region37: #{tpu_custom_call.1} parent=27 // pred_check
          %p235 = pneg %p234
        $region38: #{tpu_custom_call.1} parent=27 // pred_check_branch
          %237 = sbr.rel (%p235) target = $region40
        $region39: #{tpu_custom_call.1} parent=27 // pred_region
          %238 = vst [vmem:[#allocation2] sm:$0xf] 0.0
          %239 = vst [vmem:[#allocation2 + $0x4] sm:$0xf] 0.0
          %240 = vst [vmem:[#allocation2 + $0x8] sm:$0xf] 0.0
          %241 = vst [vmem:[#allocation2 + $0xc] sm:$0xf] 0.0
        $region40: #{tpu_custom_call.1} parent=27 // pred_fallthru
          _
        %v242 = vld [vmem:[%s197] sm:$0x3]
        %v243 = vld [vmem:[%s197 + $0x2] sm:$0x3]
        %v244 = vld [vmem:[%s197 + $0x4] sm:$0x3]
        %v245 = vld [vmem:[%s197 + $0x6] sm:$0x3]
        %v246 = vld [vmem:[%s206] sm:$0x3]
        %vm247 = vcmask 1041408
        %v248 = vsel %vm247, %v242, -inf
        %v249 = vsel %vm247, %v243, -inf
        %v250 = vsel %vm247, %v244, -inf
        %v251 = vsel %vm247, %v245, -inf
        %v252 = vmax.f32 %v248, %v249
        %v253 = vmax.f32 %v250, %v251
        %v254 = vmax.f32 %v252, %v253
        %v255 = vsub.f32 %v242, %v254
        %v256 = vsub.f32 %v243, %v254
        %v257 = vsub.f32 %v244, %v254
        %v258 = vsub.f32 %v245, %v254
        %v259 = vmul.f32 %v255, 1.442695
        %v260 = vpow.pop %v259
        %v261 = vmul.f32 %v256, 1.442695
        %v262 = vpow.pop %v261
        %v263 = vmul.f32 %v257, 1.442695
        %v264 = vpow.pop %v263
        %v265 = vmul.f32 %v258, 1.442695
        %v266 = vpow.pop %v265
        %v267 = vsel %vm247, %v260, 0.0
        %v268 = vsel %vm247, %v262, 0.0
        %v269 = vadd.f32 %v267, %v268
        %v270 = vsel %vm247, %v264, 0.0
        %v271 = vadd.f32 %v269, %v270
        %v272 = vsel %vm247, %v266, 0.0
        %v273 = vadd.f32 %v271, %v272
        %v274 = vrcp.pop %v273
        %v275 = vmul.f32 %v273, %v274
        %v276 = vsub.f32 2.0, %v275
        %v277 = vmul.f32 %v274, %v276
        %v278 = vmul.f32 %v260, %v277
        %v279 = vmul.f32 %v262, %v277
        %v280 = vmul.f32 %v264, %v277
        %v281 = vmul.f32 %v266, %v277
        %v282 = vlog2.pop %v273
        %v283 = vmul.f32 %v282, 0.6931472
        %v284 = vadd.f32 %v254, %v283
        %vm285 = vcmp.eq.s32.totalorder %v246, 0
        %vm286 = vcmp.eq.s32.totalorder %v246, 1
        %vm287 = vcmp.eq.s32.totalorder %v246, 2
        %vm288 = vcmp.eq.s32.totalorder %v246, 3
        %v289 = vsel %vm285, 1, 0
        %v290 = vsel %vm286, 1, 0
        %v291 = vsel %vm287, 1, 0
        %v292 = vsel %vm288, 1, 0
        %v293 = vcvt.s32.f32 %v289
        %v294 = vcvt.s32.f32 %v290
        %v295 = vcvt.s32.f32 %v291
        %v296 = vcvt.s32.f32 %v292
        %v297 = vld [vmem:[#allocation2] sm:$0xf]
        %v298 = vsel %vm247, %v293, 0.0
        %v299 = vrot.slane %v298, 4
        %v300 = vadd.f32 %v298, %v299
        %v301 = vrot.slane %v300, 2
        %v302 = vadd.f32 %v300, %v301
        %v303 = vrot.slane %v302, 1
        %v304 = vadd.f32 %v302, %v303
        %v305 = vsel %vm247, %v294, 0.0
        %v306 = vrot.slane %v305, 4
        %v307 = vadd.f32 %v305, %v306
        %v308 = vrot.slane %v307, 2
        %v309 = vadd.f32 %v307, %v308
        %v310 = vrot.slane %v309, 1
        %v311 = vadd.f32 %v309, %v310
        %v312 = vsel %vm247, %v295, 0.0
        %v313 = vrot.slane %v312, 4
        %v314 = vadd.f32 %v312, %v313
        %v315 = vrot.slane %v314, 2
        %v316 = vadd.f32 %v314, %v315
        %v317 = vrot.slane %v316, 1
        %v318 = vadd.f32 %v316, %v317
        %v319 = vsel %vm247, %v296, 0.0
        %v320 = vrot.slane %v319, 4
        %v321 = vadd.f32 %v319, %v320
        %v322 = vrot.slane %v321, 2
        %v323 = vadd.f32 %v321, %v322
        %v324 = vrot.slane %v323, 1
        %v325 = vadd.f32 %v323, %v324
        %vm330 = vcmask 1041409
        %v331 = vsel %vm330, %v311, %v304
        %vm332 = vcmask 1042434
        %v333 = vsel %vm332, %v318, %v331
        %vm334 = vcmask 1043459
        %v335 = vsel %vm334, %v325, %v333
        %v337 = vadd.f32 %v297, %v335
        %338 = vst [vmem:[#allocation2] sm:$0xf] %v337
        %s339 = scalar_lea.vmem [#allocation2], 4
        %v340 = vld [vmem:[%s339] sm:$0xf]
        %v341 = vmul.f32 %v278, %v293
        %v342 = vmul.f32 %v279, %v294
        %v343 = vmul.f32 %v280, %v295
        %v344 = vmul.f32 %v281, %v296
        %v345 = vsel %vm247, %v341, 0.0
        %v346 = vrot.slane %v345, 4
        %v347 = vadd.f32 %v345, %v346
        %v348 = vrot.slane %v347, 2
        %v349 = vadd.f32 %v347, %v348
        %v350 = vrot.slane %v349, 1
        %v351 = vadd.f32 %v349, %v350
        %v352 = vsel %vm247, %v342, 0.0
        %v353 = vrot.slane %v352, 4
        %v354 = vadd.f32 %v352, %v353
        %v355 = vrot.slane %v354, 2
        %v356 = vadd.f32 %v354, %v355
        %v357 = vrot.slane %v356, 1
        %v358 = vadd.f32 %v356, %v357
        %v359 = vsel %vm247, %v343, 0.0
        %v360 = vrot.slane %v359, 4
        %v361 = vadd.f32 %v359, %v360
        %v362 = vrot.slane %v361, 2
        %v363 = vadd.f32 %v361, %v362
        %v364 = vrot.slane %v363, 1
        %v365 = vadd.f32 %v363, %v364
        %v366 = vsel %vm247, %v344, 0.0
        %v367 = vrot.slane %v366, 4
        %v368 = vadd.f32 %v366, %v367
        %v369 = vrot.slane %v368, 2
        %v370 = vadd.f32 %v368, %v369
        %v371 = vrot.slane %v370, 1
        %v372 = vadd.f32 %v370, %v371
        %v377 = vsel %vm330, %v358, %v351
        %v378 = vsel %vm332, %v365, %v377
        %v379 = vsel %vm334, %v372, %v378
        %v381 = vadd.f32 %v340, %v379
        %382 = vst [vmem:[%s339] sm:$0xf] %v381
        %s383 = scalar_lea.vmem [#allocation2], 8
        %v384 = vld [vmem:[%s383] sm:$0xf]
        %v385 = vsel %vm247, %v278, 0.0
        %v386 = vrot.slane %v385, 4
        %v387 = vadd.f32 %v385, %v386
        %v388 = vrot.slane %v387, 2
        %v389 = vadd.f32 %v387, %v388
        %v390 = vrot.slane %v389, 1
        %v391 = vadd.f32 %v389, %v390
        %v392 = vsel %vm247, %v279, 0.0
        %v393 = vrot.slane %v392, 4
        %v394 = vadd.f32 %v392, %v393
        %v395 = vrot.slane %v394, 2
        %v396 = vadd.f32 %v394, %v395
        %v397 = vrot.slane %v396, 1
        %v398 = vadd.f32 %v396, %v397
        %v399 = vsel %vm247, %v280, 0.0
        %v400 = vrot.slane %v399, 4
        %v401 = vadd.f32 %v399, %v400
        %v402 = vrot.slane %v401, 2
        %v403 = vadd.f32 %v401, %v402
        %v404 = vrot.slane %v403, 1
        %v405 = vadd.f32 %v403, %v404
        %v406 = vsel %vm247, %v281, 0.0
        %v407 = vrot.slane %v406, 4
        %v408 = vadd.f32 %v406, %v407
        %v409 = vrot.slane %v408, 2
        %v410 = vadd.f32 %v408, %v409
        %v411 = vrot.slane %v410, 1
        %v412 = vadd.f32 %v410, %v411
        %v417 = vsel %vm330, %v398, %v391
        %v418 = vsel %vm332, %v405, %v417
        %v419 = vsel %vm334, %v412, %v418
        %v421 = vadd.f32 %v384, %v419
        %422 = vst [vmem:[%s383] sm:$0xf] %v421
        %s423 = scalar_lea.vmem [#allocation2], 12
        %v424 = vld [vmem:[%s423] sm:$0xf]
        %v425 = vsub.f32 %v284, %v242
        %v426 = vsub.f32 %v284, %v243
        %v427 = vsub.f32 %v284, %v244
        %v428 = vsub.f32 %v284, %v245
        %v429 = vmul.f32 %v293, %v425
        %v430 = vmul.f32 %v294, %v426
        %v431 = vmul.f32 %v295, %v427
        %v432 = vmul.f32 %v296, %v428
        %v433 = vsel %vm247, %v429, 0.0
        %v434 = vrot.slane %v433, 4
        %v435 = vadd.f32 %v433, %v434
        %v436 = vrot.slane %v435, 2
        %v437 = vadd.f32 %v435, %v436
        %v438 = vrot.slane %v437, 1
        %v439 = vadd.f32 %v437, %v438
        %v440 = vsel %vm247, %v430, 0.0
        %v441 = vrot.slane %v440, 4
        %v442 = vadd.f32 %v440, %v441
        %v443 = vrot.slane %v442, 2
        %v444 = vadd.f32 %v442, %v443
        %v445 = vrot.slane %v444, 1
        %v446 = vadd.f32 %v444, %v445
        %v447 = vsel %vm247, %v431, 0.0
        %v448 = vrot.slane %v447, 4
        %v449 = vadd.f32 %v447, %v448
        %v450 = vrot.slane %v449, 2
        %v451 = vadd.f32 %v449, %v450
        %v452 = vrot.slane %v451, 1
        %v453 = vadd.f32 %v451, %v452
        %v454 = vsel %vm247, %v432, 0.0
        %v455 = vrot.slane %v454, 4
        %v456 = vadd.f32 %v454, %v455
        %v457 = vrot.slane %v456, 2
        %v458 = vadd.f32 %v456, %v457
        %v459 = vrot.slane %v458, 1
        %v460 = vadd.f32 %v458, %v459
        %v465 = vsel %vm330, %v446, %v439
        %v466 = vsel %vm332, %v453, %v465
        %v467 = vsel %vm334, %v460, %v466
        %v469 = vadd.f32 %v424, %v467
        %470 = vst [vmem:[%s423] sm:$0xf] %v469
        // Predicated region
        $region41: #{tpu_custom_call.1} parent=27 // pred_check
          %p471 = pneg %p234
        $region42: #{tpu_custom_call.1} parent=27 // pred_check_branch
          %473 = sbr.rel (%p471) target = $region44
        $region43: #{tpu_custom_call.1} parent=27 // pred_region
          %v474 = vld [vmem:[#allocation2] sm:$0xf]
          %v475 = vld [vmem:[#allocation2 + $0x4] sm:$0xf]
          %v476 = vld [vmem:[#allocation2 + $0x8] sm:$0xf]
          %v477 = vld [vmem:[#allocation2 + $0xc] sm:$0xf]
          %478 = vst [vmem:[%s231] sm:$0xf] %v474
          %479 = vst [vmem:[%s231 + $0x4] sm:$0xf] %v475
          %480 = vst [vmem:[%s231 + $0x8] sm:$0xf] %v476
          %481 = vst [vmem:[%s231 + $0xc] sm:$0xf] %v477
        $region44: #{tpu_custom_call.1} parent=27 // pred_fallthru
          _
        %s482 = sand.u32 %s111, 1
        %s483 = scalar_lea.sflag [#allocation5], %s482
        %s484 = sand.u32 %s111, 1
        %s485 = smul.addr %s484, 16
        %s486 = scalar_lea.vmem [#allocation8], %s485
        // Predicated region
        $region45: #{tpu_custom_call.1} parent=27 // pred_check
          %p487 = pneg %p121
        $region46: #{tpu_custom_call.1} parent=27 // pred_check_branch
          %489 = sbr.rel (%p487) target = $region48
        $region47: #{tpu_custom_call.1} parent=27 // pred_region
          %s491 = ssub.s32 256, 256
          %492 = vsyncadd %s483, %s491
          %s493 = smul.addr %s28, 4
          %s494 = smul.addr %s27, 4
          %s495 = sadd.s32 %s493, %s494
          %s496 = smul.addr %s495, 64
          %s497 = scalar_lea.hbm %s2, %s496
          %s498 = sshll.u32 %s486, 4
          %s499 = int_to_ptr.vmem [resolvable:$true] %s498
          %504 = dma.vmem_to_hbm [thread:$0]  %s499, 256, %s497, %s483, 64, 64, 4
        $region48: #{tpu_custom_call.1} parent=27 // pred_fallthru
          _
      $region28: #{tpu_custom_call.1} parent=5 // pred_fallthru
        _
      %p505 = scmp.le.s32.totalorder 2, %s17
      // Predicated region
      $region49: #{tpu_custom_call.1} parent=5 // pred_check
        %p506 = pneg %p505
      $region50: #{tpu_custom_call.1} parent=5 // pred_check_branch
        %508 = sbr.rel (%p506) target = $region52
      $region51: #{tpu_custom_call.1} parent=5 // pred_region
        %s509 = ssub.s32 %s17, 2
        // Predicated region
        $region53: #{tpu_custom_call.1} parent=51 // pred_check
          %p510 = pneg %p127
        $region54: #{tpu_custom_call.1} parent=51 // pred_check_branch
          %512 = sbr.rel (%p510) target = $region56
        $region55: #{tpu_custom_call.1} parent=51 // pred_region
          %s513 = sand.u32 %s112, 1
          %s514 = scalar_lea.sflag [#allocation5], %s513
          %s515 = sand.u32 %s112, 1
          %s516 = smul.addr %s515, 16
          %s517 = scalar_lea.vmem [#allocation8], %s516
          %518 = dma.done %s514, 256
        $region56: #{tpu_custom_call.1} parent=51 // pred_fallthru
          _
      $region52: #{tpu_custom_call.1} parent=5 // pred_fallthru
        _
    $region6: #{tpu_custom_call.1} parent=1 // loop_footer
      %s21 = sadd.s32 1, %s17
    $region7: #{tpu_custom_call.1} parent=1 // loop_footer_branch
      %16 = sbr.rel target = $region3
    $region8: #{tpu_custom_call.1} parent=1 // loop_exit
      _
    %519 = vsyncpa [#allocation4], 1
    %s520 = scalar_lea.sflag [#allocation4], 1
    %521 = vsyncpa %s520, 1
    %522 = vsyncpa [#allocation7], 1
    %s523 = scalar_lea.sflag [#allocation7], 1
    %524 = vsyncpa %s523, 1
    %525 = vsyncpa [#allocation5], 1
    %s526 = scalar_lea.sflag [#allocation5], 1
    %527 = vsyncpa %s526, 1

</llo_original>
